<compile_context>
chip_gen: v5e
topology: v5e:2x2
jax: 0.10.0
libtpu: 0.0.40
codegen_flags: <defaults>
</compile_context>

<pallas_src>
import jax
import jax.numpy as jnp
from jax import lax
from jax.experimental import pallas as pl
from jax.experimental.pallas import tpu as pltpu

_LANE = 128
# Per-step VMEM working-set target: double-buffered input block plus the f32
# per-position temporaries the kernel keeps live (counted conservatively).
_VMEM_WORKING_BYTES = 20 * 1024 * 1024
_NUM_F32_TEMPS = 12
# Raise v5e's 16 MiB scoped-VMEM default; matches the v6e/v7x defaults.
_VMEM_LIMIT_BYTES = 32 * 1024 * 1024


def _sublane(dtype):
    # dtype-aware sublane tile: 8 for 4-byte, 16 for bf16/f16, 32 for int8/fp8
    return max(8, 32 // jnp.dtype(dtype).itemsize)


def dice_jac_nll_loss(preds, target, threshold=0.5, smooth=1.0,
                      *, max_block_elems=None):
    """Drop-in for DiceJacNLLLoss.forward(preds, target, threshold, smooth).

    preds:  (N, C, H, W) logits / log-probs.
    target: (N, H, W) integer class labels (kept in their native dtype).
    max_block_elems: optional cap on spatial elements per grid step (testing).
    """
    n, c, h, w = preds.shape
    assert c >= 2, "softmax channel 1 is used; need at least 2 channels"
    s = h * w
    thr = float(threshold)

    # Labels stay in their native (possibly narrow) integer dtype; only
    # non-integer inputs get a wrapper-side cast.
    t = target if jnp.issubdtype(target.dtype, jnp.integer) \
        else target.astype(jnp.int32)

    logit_isz = jnp.dtype(preds.dtype).itemsize
    label_isz = jnp.dtype(t.dtype).itemsize

    dense = (s % _LANE == 0)
    if dense:
        # Lane-dense (rows, 128) spatial layout (free reshape, no copies).
        rows = s // _LANE
        sub = _sublane(preds.dtype)
        per_row = (2 * (c * logit_isz + label_isz) * _LANE
                   + _NUM_F32_TEMPS * 4 * _LANE)
        cap = max(sub, _VMEM_WORKING_BYTES // per_row // sub * sub)
        if max_block_elems is not None:
            cap = min(cap, max(sub, (max_block_elems // _LANE) // sub * sub))
        tile = rows if rows <= cap else cap
        units, R_blk, L_blk = rows, tile, _LANE
        x_v = preds.reshape(n, c, rows, _LANE)
        t_v = t.reshape(n, 1, rows, _LANE)
        if tile % 8 == 0:
            acc_r, fold_groups = 8, tile // 8
        else:                      # single small block (tile == rows < 8)
            acc_r, fold_groups = tile, 1
        acc_l = _LANE
        sp_dim = 2                 # spatial grid index tiles the row axis
    else:
        # Ragged spatial size: keep the flat layout, let Pallas clip the last
        # (partial) block and mask it in-kernel.  No jnp.pad -> no extra HBM
        # pass over the logits.  (Sublane-sparse layout: trades some VPU
        # efficiency for the saved HBM pass; this is the rare fallback.)
        per_elem = 2 * (c * logit_isz + label_isz) + _NUM_F32_TEMPS * 4
        cap = max(_LANE, _VMEM_WORKING_BYTES // per_elem // _LANE * _LANE)
        if max_block_elems is not None:
            cap = min(cap, max(_LANE, max_block_elems // _LANE * _LANE))
        blk = s if s <= cap else cap
        units, R_blk, L_blk = s, 1, blk
        x_v = preds.reshape(n, c, 1, s)
        t_v = t.reshape(n, 1, 1, s)
        if blk % _LANE == 0:
            acc_r, acc_l, fold_groups = 1, _LANE, blk // _LANE
        else:                      # single small block (blk == s, not 128-mult)
            acc_r, acc_l, fold_groups = 1, blk, 1
        sp_dim = 3                 # spatial grid index tiles the lane axis

    unit_block = R_blk if dense else L_blk
    nsp_total = pl.cdiv(units, unit_block)
    needs_mask = nsp_total * unit_block > units
    first_maskable = nsp_total - 1

    # v7x has two TensorCores; the only parallel axis is N, so for N == 1
    # split the spatial blocks across a second parallel slot.
    n_split = 2 if (n == 1 and nsp_total >= 2 and nsp_total % 2 == 0) else 1
    # TODO(synk): odd nsp_total with N == 1 still runs on one core; an exact
    # 2-way split would need a clamped index_map for the phantom tail block.
    nsp_per = nsp_total // n_split

    def fold(v):
        if fold_groups == 1:
            return v
        # Layout-preserving fold: (G*8,128)->(G,8,128) / (1,G*128)->(G,1,128),
        # then elementwise adds over the leading axis.
        return v.reshape(fold_groups, acc_r, acc_l).sum(axis=0)

    def kernel(x_ref, t_ref, out_ref):
        sp = pl.program_id(0)
        j = pl.program_id(2)
        jj = sp * nsp_per + j      # global spatial block index

        @pl.when(j == 0)
        def _init():
            out_ref[...] = jnp.zeros_like(out_ref)

        tb = t_ref[0, 0]           # (R_blk, L_blk) integer labels

        # Streamed softmax over the small static class axis (no (C,R,L) f32
        # materialization).  Pass 1: running channel max.
        m = x_ref[0, 0].astype(jnp.float32)
        for ch in range(1, c):
            m = jnp.maximum(m, x_ref[0, ch].astype(jnp.float32))

        # Pass 2: exp-sum (EUP), channel-1 numerator, NLL gather (one-hot).
        denom = jnp.zeros_like(m)
        g = jnp.zeros_like(m)
        e1 = None
        for ch in range(c):
            xc = x_ref[0, ch].astype(jnp.float32)
            e = jnp.exp(xc - m)
            denom = denom + e
            if ch == 1:
                e1 = e
            g = g + jnp.where(tb == ch, xc, 0.0)

        # Exact divide keeps parity with the reference softmax;
        # pl.reciprocal(denom, approx=True) would free VPU slots on v7x.
        p1 = e1 / denom
        # The original dice()/jaccard_index() calls swap their arguments, so
        # the threshold binarizes the *labels*.
        b = (tb.astype(jnp.float32) > thr).astype(jnp.float32)

        def accumulate(p1v, bv, gv):
            out_ref[0, 0, 0] += fold(p1v * bv)   # intersection
            out_ref[0, 0, 1] += fold(p1v)        # sum softmax[:, 1]
            out_ref[0, 0, 2] += fold(bv)         # sum binarized labels
            out_ref[0, 0, 3] += fold(gv)         # NLL gather sum

        if needs_mask:
            # Only the last global block has a ragged tail; interior blocks
            # skip the iota/compare/select work entirely.
            @pl.when(jj < first_maskable)
            def _interior():
                accumulate(p1, b, g)

            @pl.when(jj >= first_maskable)
            def _tail():
                axis = 0 if dense else 1
                unit = jj * unit_block + lax.broadcasted_iota(
                    jnp.int32, (R_blk, L_blk), axis)
                valid = unit < units
                zero = jnp.zeros_like(p1)
                accumulate(jnp.where(valid, p1, zero),
                           jnp.where(valid, b, zero),
                           jnp.where(valid, g, zero))
        else:
            accumulate(p1, b, g)

    def in_map(sp, b_, j):
        idx = [b_, 0, 0, 0]
        idx[sp_dim] = sp * nsp_per + j
        return tuple(idx)

    out_map = lambda sp, b_, j: (sp, b_, 0, 0, 0)

    out_bytes = n_split * n * 4 * acc_r * acc_l * 4
    cost = pl.CostEstimate(
        flops=int(n * s * (6 * c + 12)),
        transcendentals=int(n * s * c),
        bytes_accessed=int(n * c * s * logit_isz + n * s * label_isz
                           + out_bytes))

    partials = pl.pallas_call(
        kernel,
        out_shape=jax.ShapeDtypeStruct((n_split, n, 4, acc_r, acc_l),
                                       jnp.float32),
        grid_spec=pltpu.PrefetchScalarGridSpec(
            num_scalar_prefetch=0,
            grid=(n_split, n, nsp_per),
            in_specs=[
                pl.BlockSpec((1, c, R_blk, L_blk), in_map),
                pl.BlockSpec((1, 1, R_blk, L_blk), in_map),
            ],
            out_specs=pl.BlockSpec((1, 1, 4, acc_r, acc_l), out_map),
        ),
        compiler_params=pltpu.CompilerParams(
            dimension_semantics=("parallel", "parallel", "arbitrary"),
            vmem_limit_bytes=_VMEM_LIMIT_BYTES),
        cost_estimate=cost,
    )(x_v, t_v)

    # Tiny finalize on the (n_split, N, 4, acc_r, acc_l) partials.
    sums = jnp.sum(partials, axis=(0, 3, 4))          # (N, 4)
    inter = sums[:, 0]
    ssum = sums[:, 1] + sums[:, 2]
    dice_metric = 2.0 * inter / ssum                  # dice() ignores smooth
    jac_metric = (inter + smooth) / (ssum - inter + smooth)
    dice_l = (1.0 - jnp.mean(dice_metric)) * smooth
    jac_l = (1.0 - jnp.mean(jac_metric)) * smooth
    nll = -jnp.sum(sums[:, 3]) / (n * h * w)
    return nll + dice_l + jac_l


def _reference(preds, target, threshold=0.5, smooth=1.0):
    """Pure-JAX mirror of the PyTorch DiceJacNLLLoss.forward."""
    n, c, h, w = preds.shape
    t = target.astype(jnp.int32)
    gathered = jnp.take_along_axis(preds.astype(jnp.float32),
                                   t[:, None, :, :], axis=1)[:, 0]
    nll = -jnp.mean(gathered)
    p1 = jax.nn.softmax(preds.astype(jnp.float32), axis=1)[:, 1]
    b = (t.astype(jnp.float32) > threshold).astype(jnp.float32)
    pf = p1.reshape(n, -1)
    bf = b.reshape(n, -1)
    inter = jnp.sum(pf * bf, axis=1)
    ssum = jnp.sum(pf + bf, axis=1)
    dice_m = 2.0 * inter / ssum
    jac_m = (inter + smooth) / (ssum - inter + smooth)
    return (nll + (1.0 - jnp.mean(dice_m)) * smooth
            + (1.0 - jnp.mean(jac_m)) * smooth)


if __name__ == "__main__":
    key = jax.random.PRNGKey(0)

    # (N, C, H, W), max_block_elems (None => production block sizes)
    cases = [
        ((2, 4, 16, 16), None),    # dense layout, single spatial step
        ((2, 3, 16, 160), 1024),   # dense, multi-step, masked ragged row tail
        ((2, 2, 10, 30), 128),     # ragged S (H*W % 128 != 0), masked tail
        ((1, 2, 16, 128), 1024),   # N == 1: spatial split feeds both TCs
    ]
    for i, (shape, mbe) in enumerate(cases):
        key, kx, kt = jax.random.split(key, 3)
        n_, c_, h_, w_ = shape
        preds = jax.random.normal(kx, shape, dtype=jnp.float32)
        target = jax.random.randint(kt, (n_, h_, w_), 0, c_, dtype=jnp.int32)
        loss = dice_jac_nll_loss(preds, target, max_block_elems=mbe)
        jax.block_until_ready(loss)
        ref = _reference(preds, target)
        assert jnp.allclose(loss, ref, rtol=1e-5, atol=1e-5), (i, loss, ref)
    print("KERNEL_OK")
</pallas_src>

<mosaic_0001>
module attributes {stable_mosaic.version = 11 : i64} {
  func.func @kernel(%arg0: i32, %arg1: i32, %arg2: i32, %arg3: memref<1x4x2x128xf32, #tpu.memory_space<vmem>>, %arg4: memref<1x1x2x128xi32, #tpu.memory_space<vmem>>, %arg5: memref<1x1x4x2x128xf32, #tpu.memory_space<vmem>>) attributes {dimension_semantics = [#tpu.dimension_semantics<parallel>, #tpu.dimension_semantics<parallel>, #tpu.dimension_semantics<arbitrary>], iteration_bounds = array<i64: 1, 2, 1>, scalar_prefetch = 0 : i64, scratch_operands = 0 : i64, tpu.core_type = #tpu.core_type<tc>, window_params = [{transform_indices = @transform_0, window_bounds = array<i64: 1, 4, 2, 128>}, {transform_indices = @transform_1, window_bounds = array<i64: 1, 1, 2, 128>}, {transform_indices = @transform_2, window_bounds = array<i64: 1, 1, 4, 2, 128>}]} {
    %c0_i32 = arith.constant 0 : i32
    %0 = arith.cmpi eq, %arg2, %c0_i32 : i32
    %1 = arith.extui %0 : i1 to i32
    %c0_i32_0 = arith.constant 0 : i32
    %2 = arith.cmpi ne, %1, %c0_i32_0 : i32
    scf.if %2 {
      %cst_80 = arith.constant 0.000000e+00 : f32
      %89 = vector.broadcast %cst_80 : f32 to vector<1x1x4x2x128xf32>
      %c0_81 = arith.constant 0 : index
      %c0_82 = arith.constant 0 : index
      %c0_83 = arith.constant 0 : index
      %c0_84 = arith.constant 0 : index
      %c0_85 = arith.constant 0 : index
      %90 = vector.load %arg5[%c0_81, %c0_82, %c0_83, %c0_84, %c0_85] : memref<1x1x4x2x128xf32, #tpu.memory_space<vmem>>, vector<1x1x4x2x128xf32>
      tpu.vector_store %arg5[%c0_81, %c0_82, %c0_83, %c0_84, %c0_85], %89 {strides = array<i32>} : memref<1x1x4x2x128xf32, #tpu.memory_space<vmem>>, vector<1x1x4x2x128xf32>,
    } else {
    }
    %c0 = arith.constant 0 : index
    %c0_1 = arith.constant 0 : index
    %c0_2 = arith.constant 0 : index
    %c0_3 = arith.constant 0 : index
    %3 = vector.load %arg4[%c0, %c0_1, %c0_2, %c0_3] : memref<1x1x2x128xi32, #tpu.memory_space<vmem>>, vector<1x1x2x128xi32>
    %4 = vector.shape_cast %3 : vector<1x1x2x128xi32> to vector<2x128xi32>
    %c0_4 = arith.constant 0 : index
    %c0_5 = arith.constant 0 : index
    %c0_6 = arith.constant 0 : index
    %c0_7 = arith.constant 0 : index
    %5 = vector.load %arg3[%c0_4, %c0_5, %c0_6, %c0_7] : memref<1x4x2x128xf32, #tpu.memory_space<vmem>>, vector<1x1x2x128xf32>
    %6 = vector.shape_cast %5 : vector<1x1x2x128xf32> to vector<2x128xf32>
    %c0_8 = arith.constant 0 : index
    %c1 = arith.constant 1 : index
    %c0_9 = arith.constant 0 : index
    %c0_10 = arith.constant 0 : index
    %7 = vector.load %arg3[%c0_8, %c1, %c0_9, %c0_10] : memref<1x4x2x128xf32, #tpu.memory_space<vmem>>, vector<1x1x2x128xf32>
    %8 = vector.shape_cast %7 : vector<1x1x2x128xf32> to vector<2x128xf32>
    %9 = arith.maximumf %6, %8 : vector<2x128xf32>
    %c0_11 = arith.constant 0 : index
    %c2 = arith.constant 2 : index
    %c0_12 = arith.constant 0 : index
    %c0_13 = arith.constant 0 : index
    %10 = vector.load %arg3[%c0_11, %c2, %c0_12, %c0_13] : memref<1x4x2x128xf32, #tpu.memory_space<vmem>>, vector<1x1x2x128xf32>
    %11 = vector.shape_cast %10 : vector<1x1x2x128xf32> to vector<2x128xf32>
    %12 = arith.maximumf %9, %11 : vector<2x128xf32>
    %c0_14 = arith.constant 0 : index
    %c3 = arith.constant 3 : index
    %c0_15 = arith.constant 0 : index
    %c0_16 = arith.constant 0 : index
    %13 = vector.load %arg3[%c0_14, %c3, %c0_15, %c0_16] : memref<1x4x2x128xf32, #tpu.memory_space<vmem>>, vector<1x1x2x128xf32>
    %14 = vector.shape_cast %13 : vector<1x1x2x128xf32> to vector<2x128xf32>
    %15 = arith.maximumf %12, %14 : vector<2x128xf32>
    %cst = arith.constant 0.000000e+00 : f32
    %16 = vector.broadcast %cst : f32 to vector<2x128xf32>
    %cst_17 = arith.constant 0.000000e+00 : f32
    %17 = vector.broadcast %cst_17 : f32 to vector<2x128xf32>
    %c0_18 = arith.constant 0 : index
    %c0_19 = arith.constant 0 : index
    %c0_20 = arith.constant 0 : index
    %c0_21 = arith.constant 0 : index
    %18 = vector.load %arg3[%c0_18, %c0_19, %c0_20, %c0_21] : memref<1x4x2x128xf32, #tpu.memory_space<vmem>>, vector<1x1x2x128xf32>
    %19 = vector.shape_cast %18 : vector<1x1x2x128xf32> to vector<2x128xf32>
    %20 = arith.subf %19, %15 : vector<2x128xf32>
    %21 = math.exp %20 : vector<2x128xf32>
    %22 = arith.addf %16, %21 : vector<2x128xf32>
    %c0_i32_22 = arith.constant 0 : i32
    %23 = vector.broadcast %c0_i32_22 : i32 to vector<2x128xi32>
    %24 = arith.cmpi eq, %4, %23 : vector<2x128xi32>
    %cst_23 = arith.constant 0.000000e+00 : f32
    %25 = vector.broadcast %cst_23 : f32 to vector<2x128xf32>
    %26 = arith.select %24, %19, %25 : vector<2x128xi1>, vector<2x128xf32>
    %27 = arith.addf %17, %26 : vector<2x128xf32>
    %c0_24 = arith.constant 0 : index
    %c1_25 = arith.constant 1 : index
    %c0_26 = arith.constant 0 : index
    %c0_27 = arith.constant 0 : index
    %28 = vector.load %arg3[%c0_24, %c1_25, %c0_26, %c0_27] : memref<1x4x2x128xf32, #tpu.memory_space<vmem>>, vector<1x1x2x128xf32>
    %29 = vector.shape_cast %28 : vector<1x1x2x128xf32> to vector<2x128xf32>
    %30 = arith.subf %29, %15 : vector<2x128xf32>
    %31 = math.exp %30 : vector<2x128xf32>
    %32 = arith.addf %22, %31 : vector<2x128xf32>
    %c1_i32 = arith.constant 1 : i32
    %33 = vector.broadcast %c1_i32 : i32 to vector<2x128xi32>
    %34 = arith.cmpi eq, %4, %33 : vector<2x128xi32>
    %cst_28 = arith.constant 0.000000e+00 : f32
    %35 = vector.broadcast %cst_28 : f32 to vector<2x128xf32>
    %36 = arith.select %34, %29, %35 : vector<2x128xi1>, vector<2x128xf32>
    %37 = arith.addf %27, %36 : vector<2x128xf32>
    %c0_29 = arith.constant 0 : index
    %c2_30 = arith.constant 2 : index
    %c0_31 = arith.constant 0 : index
    %c0_32 = arith.constant 0 : index
    %38 = vector.load %arg3[%c0_29, %c2_30, %c0_31, %c0_32] : memref<1x4x2x128xf32, #tpu.memory_space<vmem>>, vector<1x1x2x128xf32>
    %39 = vector.shape_cast %38 : vector<1x1x2x128xf32> to vector<2x128xf32>
    %40 = arith.subf %39, %15 : vector<2x128xf32>
    %41 = math.exp %40 : vector<2x128xf32>
    %42 = arith.addf %32, %41 : vector<2x128xf32>
    %c2_i32 = arith.constant 2 : i32
    %43 = vector.broadcast %c2_i32 : i32 to vector<2x128xi32>
    %44 = arith.cmpi eq, %4, %43 : vector<2x128xi32>
    %cst_33 = arith.constant 0.000000e+00 : f32
    %45 = vector.broadcast %cst_33 : f32 to vector<2x128xf32>
    %46 = arith.select %44, %39, %45 : vector<2x128xi1>, vector<2x128xf32>
    %47 = arith.addf %37, %46 : vector<2x128xf32>
    %c0_34 = arith.constant 0 : index
    %c3_35 = arith.constant 3 : index
    %c0_36 = arith.constant 0 : index
    %c0_37 = arith.constant 0 : index
    %48 = vector.load %arg3[%c0_34, %c3_35, %c0_36, %c0_37] : memref<1x4x2x128xf32, #tpu.memory_space<vmem>>, vector<1x1x2x128xf32>
    %49 = vector.shape_cast %48 : vector<1x1x2x128xf32> to vector<2x128xf32>
    %50 = arith.subf %49, %15 : vector<2x128xf32>
    %51 = math.exp %50 : vector<2x128xf32>
    %52 = arith.addf %42, %51 : vector<2x128xf32>
    %c3_i32 = arith.constant 3 : i32
    %53 = vector.broadcast %c3_i32 : i32 to vector<2x128xi32>
    %54 = arith.cmpi eq, %4, %53 : vector<2x128xi32>
    %cst_38 = arith.constant 0.000000e+00 : f32
    %55 = vector.broadcast %cst_38 : f32 to vector<2x128xf32>
    %56 = arith.select %54, %49, %55 : vector<2x128xi1>, vector<2x128xf32>
    %57 = arith.addf %47, %56 : vector<2x128xf32>
    %58 = arith.divf %31, %52 : vector<2x128xf32>
    %59 = arith.sitofp %4 : vector<2x128xi32> to vector<2x128xf32>
    %cst_39 = arith.constant 5.000000e-01 : f32
    %60 = vector.broadcast %cst_39 : f32 to vector<2x128xf32>
    %61 = arith.cmpf ogt, %59, %60 : vector<2x128xf32>
    %62 = arith.extui %61 : vector<2x128xi1> to vector<2x128xi32>
    %63 = arith.sitofp %62 : vector<2x128xi32> to vector<2x128xf32>
    %c0_40 = arith.constant 0 : index
    %c0_41 = arith.constant 0 : index
    %c0_42 = arith.constant 0 : index
    %c0_43 = arith.constant 0 : index
    %c0_44 = arith.constant 0 : index
    %64 = vector.load %arg5[%c0_40, %c0_41, %c0_42, %c0_43, %c0_44] : memref<1x1x4x2x128xf32, #tpu.memory_space<vmem>>, vector<1x1x1x2x128xf32>
    %65 = vector.shape_cast %64 : vector<1x1x1x2x128xf32> to vector<2x128xf32>
    %66 = arith.mulf %58, %63 : vector<2x128xf32>
    %67 = arith.addf %65, %66 : vector<2x128xf32>
    %c0_45 = arith.constant 0 : index
    %c0_46 = arith.constant 0 : index
    %c0_47 = arith.constant 0 : index
    %c0_48 = arith.constant 0 : index
    %c0_49 = arith.constant 0 : index
    %68 = vector.load %arg5[%c0_45, %c0_46, %c0_47, %c0_48, %c0_49] : memref<1x1x4x2x128xf32, #tpu.memory_space<vmem>>, vector<1x1x1x2x128xf32>
    %69 = vector.shape_cast %68 : vector<1x1x1x2x128xf32> to vector<2x128xf32>
    %70 = vector.shape_cast %67 : vector<2x128xf32> to vector<1x1x1x2x128xf32>
    tpu.vector_store %arg5[%c0_45, %c0_46, %c0_47, %c0_48, %c0_49], %70 {strides = array<i32>} : memref<1x1x4x2x128xf32, #tpu.memory_space<vmem>>, vector<1x1x1x2x128xf32>,
    %c0_50 = arith.constant 0 : index
    %c0_51 = arith.constant 0 : index
    %c1_52 = arith.constant 1 : index
    %c0_53 = arith.constant 0 : index
    %c0_54 = arith.constant 0 : index
    %71 = vector.load %arg5[%c0_50, %c0_51, %c1_52, %c0_53, %c0_54] : memref<1x1x4x2x128xf32, #tpu.memory_space<vmem>>, vector<1x1x1x2x128xf32>
    %72 = vector.shape_cast %71 : vector<1x1x1x2x128xf32> to vector<2x128xf32>
    %73 = arith.addf %72, %58 : vector<2x128xf32>
    %c0_55 = arith.constant 0 : index
    %c0_56 = arith.constant 0 : index
    %c1_57 = arith.constant 1 : index
    %c0_58 = arith.constant 0 : index
    %c0_59 = arith.constant 0 : index
    %74 = vector.load %arg5[%c0_55, %c0_56, %c1_57, %c0_58, %c0_59] : memref<1x1x4x2x128xf32, #tpu.memory_space<vmem>>, vector<1x1x1x2x128xf32>
    %75 = vector.shape_cast %74 : vector<1x1x1x2x128xf32> to vector<2x128xf32>
    %76 = vector.shape_cast %73 : vector<2x128xf32> to vector<1x1x1x2x128xf32>
    tpu.vector_store %arg5[%c0_55, %c0_56, %c1_57, %c0_58, %c0_59], %76 {strides = array<i32>} : memref<1x1x4x2x128xf32, #tpu.memory_space<vmem>>, vector<1x1x1x2x128xf32>,
    %c0_60 = arith.constant 0 : index
    %c0_61 = arith.constant 0 : index
    %c2_62 = arith.constant 2 : index
    %c0_63 = arith.constant 0 : index
    %c0_64 = arith.constant 0 : index
    %77 = vector.load %arg5[%c0_60, %c0_61, %c2_62, %c0_63, %c0_64] : memref<1x1x4x2x128xf32, #tpu.memory_space<vmem>>, vector<1x1x1x2x128xf32>
    %78 = vector.shape_cast %77 : vector<1x1x1x2x128xf32> to vector<2x128xf32>
    %79 = arith.addf %78, %63 : vector<2x128xf32>
    %c0_65 = arith.constant 0 : index
    %c0_66 = arith.constant 0 : index
    %c2_67 = arith.constant 2 : index
    %c0_68 = arith.constant 0 : index
    %c0_69 = arith.constant 0 : index
    %80 = vector.load %arg5[%c0_65, %c0_66, %c2_67, %c0_68, %c0_69] : memref<1x1x4x2x128xf32, #tpu.memory_space<vmem>>, vector<1x1x1x2x128xf32>
    %81 = vector.shape_cast %80 : vector<1x1x1x2x128xf32> to vector<2x128xf32>
    %82 = vector.shape_cast %79 : vector<2x128xf32> to vector<1x1x1x2x128xf32>
    tpu.vector_store %arg5[%c0_65, %c0_66, %c2_67, %c0_68, %c0_69], %82 {strides = array<i32>} : memref<1x1x4x2x128xf32, #tpu.memory_space<vmem>>, vector<1x1x1x2x128xf32>,
    %c0_70 = arith.constant 0 : index
    %c0_71 = arith.constant 0 : index
    %c3_72 = arith.constant 3 : index
    %c0_73 = arith.constant 0 : index
    %c0_74 = arith.constant 0 : index
    %83 = vector.load %arg5[%c0_70, %c0_71, %c3_72, %c0_73, %c0_74] : memref<1x1x4x2x128xf32, #tpu.memory_space<vmem>>, vector<1x1x1x2x128xf32>
    %84 = vector.shape_cast %83 : vector<1x1x1x2x128xf32> to vector<2x128xf32>
    %85 = arith.addf %84, %57 : vector<2x128xf32>
    %c0_75 = arith.constant 0 : index
    %c0_76 = arith.constant 0 : index
    %c3_77 = arith.constant 3 : index
    %c0_78 = arith.constant 0 : index
    %c0_79 = arith.constant 0 : index
    %86 = vector.load %arg5[%c0_75, %c0_76, %c3_77, %c0_78, %c0_79] : memref<1x1x4x2x128xf32, #tpu.memory_space<vmem>>, vector<1x1x1x2x128xf32>
    %87 = vector.shape_cast %86 : vector<1x1x1x2x128xf32> to vector<2x128xf32>
    %88 = vector.shape_cast %85 : vector<2x128xf32> to vector<1x1x1x2x128xf32>
    tpu.vector_store %arg5[%c0_75, %c0_76, %c3_77, %c0_78, %c0_79], %88 {strides = array<i32>} : memref<1x1x4x2x128xf32, #tpu.memory_space<vmem>>, vector<1x1x1x2x128xf32>,
    return
  }
  func.func @transform_0(%arg0: i32, %arg1: i32, %arg2: i32) -> (i32, i32, i32, i32) {
    %c1_i32 = arith.constant 1 : i32
    %0 = arith.muli %arg0, %c1_i32 : i32
    %1 = arith.addi %0, %arg2 : i32
    %c0_i32 = arith.constant 0 : i32
    %c0_i32_0 = arith.constant 0 : i32
    %c0_i32_1 = arith.constant 0 : i32
    return %arg1, %c0_i32, %1, %c0_i32_0 : i32, i32, i32, i32
  }
  func.func @transform_1(%arg0: i32, %arg1: i32, %arg2: i32) -> (i32, i32, i32, i32) {
    %c1_i32 = arith.constant 1 : i32
    %0 = arith.muli %arg0, %c1_i32 : i32
    %1 = arith.addi %0, %arg2 : i32
    %c0_i32 = arith.constant 0 : i32
    %c0_i32_0 = arith.constant 0 : i32
    %c0_i32_1 = arith.constant 0 : i32
    return %arg1, %c0_i32, %1, %c0_i32_0 : i32, i32, i32, i32
  }
  func.func @transform_2(%arg0: i32, %arg1: i32, %arg2: i32) -> (i32, i32, i32, i32, i32) {
    %c0_i32 = arith.constant 0 : i32
    %c0_i32_0 = arith.constant 0 : i32
    %c0_i32_1 = arith.constant 0 : i32
    %c0_i32_2 = arith.constant 0 : i32
    return %arg0, %arg1, %c0_i32, %c0_i32_0, %c0_i32_1 : i32, i32, i32, i32, i32
  }
}

</mosaic_0001>

<llo_original>
// kernel: tpu_custom_call.1
$region0: #{tpu_custom_call.1}
  #allocation0 [shape = 'u32[]', space=smem, size = 0x4, offset = 0x4, fixed_abs, tag = 'smem constant byte address 0x4 - core index']
  #allocation1 [shape = 'u32[72,128]{1,0:T(1,128)}', space=vmem, size = 0x9000, scoped, tag = 'internal scratch']
  %s0 = inlined_call_operand.hbm [shape: f32[2,4,2,128], index: 0, kind: input, shape index: {}]
  %s1 = inlined_call_operand.hbm [shape: s32[2,1,2,128], index: 1, kind: input, shape index: {}]
  %s2 = inlined_call_operand.hbm [shape: f32[1,2,4,2,128], index: 2, kind: output, shape index: {}]
  %s3 = sld [smem:[#allocation0]]
  $region53: #{tpu_custom_call.1} parent=0
    _
  %s5 = ssub.s32 1, %s3
  %s6 = scalar_select 0, %s5, %s3
  $region1: #{tpu_custom_call.1} parent=0
    #allocation2 [shape = 'u8[8192]{0}', space=vmem, size = 0x2000, scoped, tag = 'input window, operand 0']
    #allocation3 [shape = 's32[2]{0}', space=sflag, size = 0x8, scoped, tag = 'scoped memory for tpu_custom_call.1']
    #allocation4 [shape = 's32[2]{0}', space=sflag, size = 0x8, scoped, tag = 'scoped memory for tpu_custom_call.1']
    #allocation5 [shape = 'u8[2048]{0}', space=vmem, size = 0x800, scoped, tag = 'input window, operand 1']
    #allocation6 [shape = 's32[2]{0}', space=sflag, size = 0x8, scoped, tag = 'scoped memory for tpu_custom_call.1']
    #allocation7 [shape = 'u8[8192]{0}', space=vmem, size = 0x2000, scoped, tag = 'output window, operand 0']
    %7 = vsyncpa [#allocation3], 0
    %s8 = scalar_lea.sflag [#allocation3], 1
    %9 = vsyncpa %s8, 0
    %10 = vsyncpa [#allocation6], 0
    %s11 = scalar_lea.sflag [#allocation6], 1
    %12 = vsyncpa %s11, 0
    %13 = vsyncpa [#allocation4], 0
    %s14 = scalar_lea.sflag [#allocation4], 1
    %15 = vsyncpa %s14, 0
    loop: start=0, step=1, limit=4
    $region2: #{tpu_custom_call.1} parent=1 // loop_pre_header
      _
    $region3: #{tpu_custom_call.1} parent=1 // loop_header
      %s17 = sphi 0, %s21
      %p18 = scmp.ge.s32.totalorder %s17, 4
      %s24 = sphi 0, %s43
      %s25 = sphi 0, %s39
      %s26 = sphi 0, %s35
      %s27 = sphi 0, %s24
      %s28 = sphi 0, %s25
      %s29 = sphi 0, %s26
      %s30 = sphi 0, %s27
      %s31 = sphi 0, %s28
      %s32 = sphi 0, %s29
      %s50 = sphi 0, %s52
      %s53 = sphi 0, %s50
      %s54 = sphi 0, %s53
      %s70 = sphi 0, %s54
      %s80 = sphi 0, %s82
      %s83 = sphi 0, %s80
      %s84 = sphi 0, %s83
      %s100 = sphi 0, %s84
      %s108 = sphi 0, %s110
      %s111 = sphi 0, %s108
      %s112 = sphi 0, %s111
      %s128 = sphi 0, %s112
    $region4: #{tpu_custom_call.1} parent=1 // loop_header_branch
      %20 = sbr.rel (%p18) target = $region8
    $region5: #{tpu_custom_call.1} parent=1 // loop_body
      %s22 = ssub.s32 %s17, 1
      %s23 = ssub.s32 %s17, 2
      %s33 = sadd.s32 1, %s26
      %p34 = scmp.ge.s32.totalorder %s33, 1
      %s35 = scalar_select %p34, 0, %s33
      %s36 = sadd.s32 1, %s25
      %s37 = scalar_select %p34, %s36, %s25
      %p38 = scmp.ge.s32.totalorder %s37, 2
      %s39 = scalar_select %p38, 0, %s37
      %s40 = sadd.s32 1, %s24
      %s41 = scalar_select %p38, %s40, %s24
      %p42 = scmp.ge.s32.totalorder %s41, 1
      %s43 = scalar_select %p42, 0, %s41
      %s44 = sadd.s32 %s24, %s26
      %s45 = sadd.s32 %s43, %s35
      %s46 = ssub.s32 %s25, %s39
      %s47 = ssub.s32 %s44, %s45
      %s48 = sor.u32 %s46, %s47
      %p49 = scmp.eq.s32.totalorder %s48, 0
      %s51 = sadd.s32 %s50, 1
      %s52 = scalar_select %p49, %s50, %s51
      %p55 = pneg %p49
      %p56 = scmp.eq.s32.totalorder %s17, 1
      %p57 = por %p55, %p56
      %p58 = scmp.ne.s32.totalorder %s50, %s53
      %p59 = scmp.eq.s32.totalorder %s17, 0
      %p60 = por %p58, %p59
      %p61 = scmp.ne.s32.totalorder %s50, %s53
      %p62 = scmp.eq.s32.totalorder %s22, 1
      %p63 = por %p61, %p62
      %p64 = scmp.ne.s32.totalorder %s53, %s54
      %p65 = scmp.eq.s32.totalorder %s22, 0
      %p66 = por %p64, %p65
      %p67 = scmp.ne.s32.totalorder %s53, %s54
      %p68 = scmp.eq.s32.totalorder %s23, 1
      %p69 = por %p67, %p68
      %p71 = scmp.ne.s32.totalorder %s54, %s70
      %p72 = scmp.eq.s32.totalorder %s23, 0
      %p73 = por %p71, %p72
      %s74 = sadd.s32 %s24, %s26
      %s75 = sadd.s32 %s43, %s35
      %s76 = ssub.s32 %s25, %s39
      %s77 = ssub.s32 %s74, %s75
      %s78 = sor.u32 %s76, %s77
      %p79 = scmp.eq.s32.totalorder %s78, 0
      %s81 = sadd.s32 %s80, 1
      %s82 = scalar_select %p79, %s80, %s81
      %p85 = pneg %p79
      %p86 = scmp.eq.s32.totalorder %s17, 1
      %p87 = por %p85, %p86
      %p88 = scmp.ne.s32.totalorder %s80, %s83
      %p89 = scmp.eq.s32.totalorder %s17, 0
      %p90 = por %p88, %p89
      %p91 = scmp.ne.s32.totalorder %s80, %s83
      %p92 = scmp.eq.s32.totalorder %s22, 1
      %p93 = por %p91, %p92
      %p94 = scmp.ne.s32.totalorder %s83, %s84
      %p95 = scmp.eq.s32.totalorder %s22, 0
      %p96 = por %p94, %p95
      %p97 = scmp.ne.s32.totalorder %s83, %s84
      %p98 = scmp.eq.s32.totalorder %s23, 1
      %p99 = por %p97, %p98
      %p101 = scmp.ne.s32.totalorder %s84, %s100
      %p102 = scmp.eq.s32.totalorder %s23, 0
      %p103 = por %p101, %p102
      %s104 = ssub.s32 %s24, %s43
      %s105 = ssub.s32 %s25, %s39
      %s106 = sor.u32 %s104, %s105
      %p107 = scmp.eq.s32.totalorder %s106, 0
      %s109 = sadd.s32 %s108, 1
      %s110 = scalar_select %p107, %s108, %s109
      %p113 = pneg %p107
      %p114 = scmp.eq.s32.totalorder %s17, 1
      %p115 = por %p113, %p114
      %p116 = scmp.ne.s32.totalorder %s108, %s111
      %p117 = scmp.eq.s32.totalorder %s17, 0
      %p118 = por %p116, %p117
      %p119 = scmp.ne.s32.totalorder %s108, %s111
      %p120 = scmp.eq.s32.totalorder %s22, 1
      %p121 = por %p119, %p120
      %p122 = scmp.ne.s32.totalorder %s111, %s112
      %p123 = scmp.eq.s32.totalorder %s22, 0
      %p124 = por %p122, %p123
      %p125 = scmp.ne.s32.totalorder %s111, %s112
      %p126 = scmp.eq.s32.totalorder %s23, 1
      %p127 = por %p125, %p126
      %p129 = scmp.ne.s32.totalorder %s112, %s128
      %p130 = scmp.eq.s32.totalorder %s23, 0
      %p131 = por %p129, %p130
      %p132 = scmp.le.s32.totalorder 1, %s17
      %p133 = scmp.lt.s32.totalorder %s17, 3
      %p134 = pnand %p132, %p133
      %p135 = pneg %p134
      // Predicated region
      $region9: #{tpu_custom_call.1} parent=5 // pred_check
        _
      $region10: #{tpu_custom_call.1} parent=5 // pred_check_branch
        %137 = sbr.rel (%p134) target = $region12
      $region11: #{tpu_custom_call.1} parent=5 // pred_region
        %s138 = ssub.s32 %s17, 1
      $region12: #{tpu_custom_call.1} parent=5 // pred_fallthru
        _
      %p139 = scmp.lt.s32.totalorder %s17, 2
      // Predicated region
      $region13: #{tpu_custom_call.1} parent=5 // pred_check
        %p140 = pneg %p139
      $region14: #{tpu_custom_call.1} parent=5 // pred_check_branch
        %142 = sbr.rel (%p140) target = $region16
      $region15: #{tpu_custom_call.1} parent=5 // pred_region
        // Predicated region
        $region17: #{tpu_custom_call.1} parent=15 // pred_check
          %p143 = pneg %p60
        $region18: #{tpu_custom_call.1} parent=15 // pred_check_branch
          %145 = sbr.rel (%p143) target = $region20
        $region19: #{tpu_custom_call.1} parent=15 // pred_region
          %s146 = sand.u32 %s50, 1
          %s147 = scalar_lea.sflag [#allocation3], %s146
          %s148 = sand.u32 %s50, 1
          %s149 = smul.addr %s148, 8
          %s150 = scalar_lea.vmem [#allocation2], %s149
          %s151 = sadd.s32 %s24, %s26
          %153 = vsyncadd %s147, 0
          %s154 = smul.addr %s25, 4
          %s155 = sadd.s32 %s151, %s154
          %s156 = smul.addr %s155, 2
          %s157 = scalar_lea.hbm %s0, %s156
          %s158 = sshll.u32 %s157, 4
          %s159 = int_to_ptr.hbm [resolvable:$true] %s158
          %s160 = sshll.u32 %s150, 4
          %s161 = int_to_ptr.vmem [resolvable:$true] %s160
          %166 = dma.hbm_to_vmem [thread:$0]  %s159, 128, %s161, %s147, 32, 32, 2
        $region20: #{tpu_custom_call.1} parent=15 // pred_fallthru
          _
        // Predicated region
        $region21: #{tpu_custom_call.1} parent=15 // pred_check
          %p167 = pneg %p90
        $region22: #{tpu_custom_call.1} parent=15 // pred_check_branch
          %169 = sbr.rel (%p167) target = $region24
        $region23: #{tpu_custom_call.1} parent=15 // pred_region
          %s170 = sand.u32 %s80, 1
          %s171 = scalar_lea.sflag [#allocation6], %s170
          %s172 = sand.u32 %s80, 1
          %s173 = smul.addr %s172, 2
          %s174 = scalar_lea.vmem [#allocation5], %s173
          %s175 = sadd.s32 %s24, %s26
          %177 = vsyncadd %s171, 0
          %s178 = sadd.s32 %s175, %s25
          %s179 = smul.addr %s178, 2
          %s180 = scalar_lea.hbm %s1, %s179
          %s182 = sshll.u32 %s180, 4
          %s183 = int_to_ptr.hbm [resolvable:$true] %s182
          %s184 = sshll.u32 %s174, 4
          %s185 = int_to_ptr.vmem [resolvable:$true] %s184
          %187 = dma.hbm_to_vmem [thread:$0]  %s183, 32, %s185, %s171
        $region24: #{tpu_custom_call.1} parent=15 // pred_fallthru
          _
      $region16: #{tpu_custom_call.1} parent=5 // pred_fallthru
        _
      %p188 = scmp.le.s32.totalorder 1, %s17
      %p189 = scmp.lt.s32.totalorder %s17, 3
      %p190 = pnand %p188, %p189
      %p191 = pneg %p190
      // Predicated region
      $region25: #{tpu_custom_call.1} parent=5 // pred_check
        _
      $region26: #{tpu_custom_call.1} parent=5 // pred_check_branch
        %193 = sbr.rel (%p190) target = $region28
      $region27: #{tpu_custom_call.1} parent=5 // pred_region
        %s194 = ssub.s32 %s17, 1
        %s195 = sand.u32 %s53, 1
        %s196 = scalar_lea.sflag [#allocation3], %s195
        %s197 = sand.u32 %s53, 1
        %s198 = smul.addr %s197, 8
        %s199 = scalar_lea.vmem [#allocation2], %s198
        // Predicated region
        $region29: #{tpu_custom_call.1} parent=27 // pred_check
          %p200 = pneg %p66
        $region30: #{tpu_custom_call.1} parent=27 // pred_check_branch
          %202 = sbr.rel (%p200) target = $region32
        $region31: #{tpu_custom_call.1} parent=27 // pred_region
          %204 = dma.done %s196, 128
        $region32: #{tpu_custom_call.1} parent=27 // pred_fallthru
          _
        %s205 = sand.u32 %s83, 1
        %s206 = scalar_lea.sflag [#allocation6], %s205
        %s207 = sand.u32 %s83, 1
        %s208 = smul.addr %s207, 2
        %s209 = scalar_lea.vmem [#allocation5], %s208
        // Predicated region
        $region33: #{tpu_custom_call.1} parent=27 // pred_check
          %p210 = pneg %p96
        $region34: #{tpu_custom_call.1} parent=27 // pred_check_branch
          %212 = sbr.rel (%p210) target = $region36
        $region35: #{tpu_custom_call.1} parent=27 // pred_region
          %214 = dma.done %s206, 32
        $region36: #{tpu_custom_call.1} parent=27 // pred_fallthru
          _
        %s215 = sand.u32 %s53, 1
        %s216 = scalar_lea.sflag [#allocation3], %s215
        %s217 = sand.u32 %s53, 1
        %s218 = smul.addr %s217, 8
        %s219 = scalar_lea.vmem [#allocation2], %s218
        %p220 = pneg %p66
        %p221 = pneg %p63
        %s222 = sand.u32 %s83, 1
        %s223 = scalar_lea.sflag [#allocation6], %s222
        %s224 = sand.u32 %s83, 1
        %s225 = smul.addr %s224, 2
        %s226 = scalar_lea.vmem [#allocation5], %s225
        %p227 = pneg %p96
        %p228 = pneg %p93
        %p229 = pneg %p124
        %p230 = pneg %p121
        %s231 = sand.u32 %s111, 1
        %s232 = scalar_lea.sflag [#allocation4], %s231
        %s233 = sand.u32 %s111, 1
        %s234 = smul.addr %s233, 8
        %s235 = scalar_lea.vmem [#allocation7], %s234
        %s236 = sadd.s32 %s27, %s29
        %s237 = sadd.s32 %s27, %s29
        %p238 = scmp.eq.s32.totalorder %s29, 0
        // Predicated region
        $region37: #{tpu_custom_call.1} parent=27 // pred_check
          %p239 = pneg %p238
        $region38: #{tpu_custom_call.1} parent=27 // pred_check_branch
          %241 = sbr.rel (%p239) target = $region40
        $region39: #{tpu_custom_call.1} parent=27 // pred_region
          %242 = vst [vmem:[%s235] sm:$0x3] 0.0
          %243 = vst [vmem:[%s235 + $0x2] sm:$0x3] 0.0
          %244 = vst [vmem:[%s235 + $0x4] sm:$0x3] 0.0
          %245 = vst [vmem:[%s235 + $0x6] sm:$0x3] 0.0
        $region40: #{tpu_custom_call.1} parent=27 // pred_fallthru
          _
        %v246 = vld [vmem:[%s209] sm:$0x3]
        %v247 = vld [vmem:[%s199] sm:$0x3]
        %s248 = scalar_lea.vmem %s199, 2 [#allocation2]
        %v249 = vld [vmem:[%s248] sm:$0x3]
        %v250 = vmax.f32 %v247, %v249
        %s251 = scalar_lea.vmem %s199, 4 [#allocation2]
        %v252 = vld [vmem:[%s251] sm:$0x3]
        %v253 = vmax.f32 %v250, %v252
        %s254 = scalar_lea.vmem %s199, 6 [#allocation2]
        %v255 = vld [vmem:[%s254] sm:$0x3]
        %v256 = vmax.f32 %v253, %v255
        %v257 = vsub.f32 %v247, %v256
        %v258 = vmul.f32 %v257, 1.442695
        %v259 = vpow.pop %v258
        %v260 = vadd.f32 %v259, 0.0
        %vm261 = vcmp.eq.s32.totalorder %v246, 0
        %v262 = vsel %vm261, %v247, 0.0
        %v263 = vadd.f32 %v262, 0.0
        %v264 = vsub.f32 %v249, %v256
        %v265 = vmul.f32 %v264, 1.442695
        %v266 = vpow.pop %v265
        %v267 = vadd.f32 %v260, %v266
        %vm268 = vcmp.eq.s32.totalorder %v246, 1
        %v269 = vsel %vm268, %v249, 0.0
        %v270 = vadd.f32 %v263, %v269
        %v271 = vsub.f32 %v252, %v256
        %v272 = vmul.f32 %v271, 1.442695
        %v273 = vpow.pop %v272
        %v274 = vadd.f32 %v267, %v273
        %vm275 = vcmp.eq.s32.totalorder %v246, 2
        %v276 = vsel %vm275, %v252, 0.0
        %v277 = vadd.f32 %v270, %v276
        %v278 = vsub.f32 %v255, %v256
        %v279 = vmul.f32 %v278, 1.442695
        %v280 = vpow.pop %v279
        %v281 = vadd.f32 %v274, %v280
        %vm282 = vcmp.eq.s32.totalorder %v246, 3
        %v283 = vsel %vm282, %v255, 0.0
        %v284 = vadd.f32 %v277, %v283
        %v285 = vrcp.pop %v281
        %v286 = vmul.f32 %v281, %v285
        %v287 = vsub.f32 1.0, %v286
        %v288 = vmul.f32 %v285, %v287
        %v289 = vadd.f32 %v285, %v288
        %vm290 = vweird.f32 %v281
        %vm291 = vweird.f32 %v285
        %vm292 = vmor %vm290, %vm291
        %v293 = vsel %vm292, %v285, %v289
        %v294 = vand.u32 2147483647, %v281
        %vm295 = vcmp.eq.f32.partialorder %v294, 8.507059e+37
        %v296 = vand.u32 %v281, 2147483648
        %v297 = vor.u32 1.1754944e-38, %v296
        %v298 = vsel %vm295, %v297, %v293
        %v299 = vmul.f32 %v266, %v298
        %v300 = vcvt.s32.f32 %v246
        %vm301 = vcmp.gt.f32.partialorder %v300, 0.5
        %v302 = vsel %vm301, 1, 0
        %v303 = vcvt.s32.f32 %v302
        %v304 = vld [vmem:[%s235] sm:$0x3]
        %v305 = vmul.f32 %v299, %v303
        %v306 = vadd.f32 %v304, %v305
        %307 = vst [vmem:[%s235] sm:$0x3] %v306
        %s308 = scalar_lea.vmem %s235, 2 [#allocation7]
        %v309 = vld [vmem:[%s308] sm:$0x3]
        %v310 = vadd.f32 %v309, %v299
        %311 = vst [vmem:[%s308] sm:$0x3] %v310
        %s312 = scalar_lea.vmem %s235, 4 [#allocation7]
        %v313 = vld [vmem:[%s312] sm:$0x3]
        %v314 = vadd.f32 %v313, %v303
        %315 = vst [vmem:[%s312] sm:$0x3] %v314
        %s316 = scalar_lea.vmem %s235, 6 [#allocation7]
        %v317 = vld [vmem:[%s316] sm:$0x3]
        %v318 = vadd.f32 %v317, %v284
        %319 = vst [vmem:[%s316] sm:$0x3] %v318
        %s320 = sand.u32 %s111, 1
        %s321 = scalar_lea.sflag [#allocation4], %s320
        %s322 = sand.u32 %s111, 1
        %s323 = smul.addr %s322, 8
        %s324 = scalar_lea.vmem [#allocation7], %s323
        // Predicated region
        $region41: #{tpu_custom_call.1} parent=27 // pred_check
          %p325 = pneg %p121
        $region42: #{tpu_custom_call.1} parent=27 // pred_check_branch
          %327 = sbr.rel (%p325) target = $region44
        $region43: #{tpu_custom_call.1} parent=27 // pred_region
          %329 = vsyncadd %s321, 0
          %s330 = smul.addr %s28, 4
          %s331 = smul.addr %s27, 8
          %s332 = sadd.s32 %s330, %s331
          %s333 = smul.addr %s332, 2
          %s334 = scalar_lea.hbm %s2, %s333
          %s335 = sshll.u32 %s324, 4
          %s336 = int_to_ptr.vmem [resolvable:$true] %s335
          %s337 = sshll.u32 %s334, 4
          %s338 = int_to_ptr.hbm [resolvable:$true] %s337
          %343 = dma.vmem_to_hbm [thread:$0]  %s336, 128, %s338, %s321, 32, 32, 2
        $region44: #{tpu_custom_call.1} parent=27 // pred_fallthru
          _
      $region28: #{tpu_custom_call.1} parent=5 // pred_fallthru
        _
      %p344 = scmp.le.s32.totalorder 2, %s17
      // Predicated region
      $region45: #{tpu_custom_call.1} parent=5 // pred_check
        %p345 = pneg %p344
      $region46: #{tpu_custom_call.1} parent=5 // pred_check_branch
        %347 = sbr.rel (%p345) target = $region48
      $region47: #{tpu_custom_call.1} parent=5 // pred_region
        %s348 = ssub.s32 %s17, 2
        // Predicated region
        $region49: #{tpu_custom_call.1} parent=47 // pred_check
          %p349 = pneg %p127
        $region50: #{tpu_custom_call.1} parent=47 // pred_check_branch
          %351 = sbr.rel (%p349) target = $region52
        $region51: #{tpu_custom_call.1} parent=47 // pred_region
          %s352 = sand.u32 %s112, 1
          %s353 = scalar_lea.sflag [#allocation4], %s352
          %s354 = sand.u32 %s112, 1
          %s355 = smul.addr %s354, 8
          %s356 = scalar_lea.vmem [#allocation7], %s355
          %358 = dma.done %s353, 128
        $region52: #{tpu_custom_call.1} parent=47 // pred_fallthru
          _
      $region48: #{tpu_custom_call.1} parent=5 // pred_fallthru
        _
    $region6: #{tpu_custom_call.1} parent=1 // loop_footer
      %s21 = sadd.s32 1, %s17
    $region7: #{tpu_custom_call.1} parent=1 // loop_footer_branch
      %16 = sbr.rel target = $region3
    $region8: #{tpu_custom_call.1} parent=1 // loop_exit
      _
    %359 = vsyncpa [#allocation3], 1
    %s360 = scalar_lea.sflag [#allocation3], 1
    %361 = vsyncpa %s360, 1
    %362 = vsyncpa [#allocation6], 1
    %s363 = scalar_lea.sflag [#allocation6], 1
    %364 = vsyncpa %s363, 1
    %365 = vsyncpa [#allocation4], 1
    %s366 = scalar_lea.sflag [#allocation4], 1
    %367 = vsyncpa %s366, 1

</llo_original>
